<compile_context>
chip_gen: v5e
topology: v5e:2x2
jax: 0.10.0
libtpu: 0.0.40
codegen_flags: <defaults>
</compile_context>

<pallas_src>
import functools

import jax
import jax.numpy as jnp
import numpy as np
from jax import lax
from jax.experimental import pallas as pl
from jax.experimental.pallas import tpu as pltpu

EPS = 1e-6


# ----------------------------- Pallas kernels -----------------------------
def _rmsnorm_kernel(x_ref, w_ref, o_ref, *, eps):
    """Plain path: last dim C is the lane dim (used when lane packing is off)."""
    x = x_ref[...].astype(jnp.float32)                 # (tile, C)
    w = w_ref[...].astype(jnp.float32)                 # (1, C)
    ms = jnp.mean(x * x, axis=-1, keepdims=True)       # per-row mean of squares
    o_ref[...] = (w * (x * lax.rsqrt(ms + eps))).astype(o_ref.dtype)


def _rmsnorm_packed_kernel(x_ref, w_ref, seg_ref, o_ref, *, inv_c, eps):
    """Lane-dense path: each 128-lane row packs `pack = 128 // C` logical rows.

    Segmented sum-of-squares = (x*x) @ seg, where seg is the block-diagonal
    ones matrix (seg[i, j] = 1 iff i // C == j // C). One idle-MXU matmul per
    tile; result is already broadcast across each C-lane segment.
    """
    x = x_ref[...].astype(jnp.float32)                 # (tile, 128)
    w = w_ref[...].astype(jnp.float32)                 # (1, 128)
    ss = lax.dot_general(
        x * x, seg_ref[...],
        (((1,), (0,)), ((), ())),
        preferred_element_type=jnp.float32,
        precision=lax.Precision.HIGHEST,               # f32-accurate segmented sum
    )
    ms = ss * inv_c                                    # mean of squares, per segment
    o_ref[...] = (w * (x * lax.rsqrt(ms + eps))).astype(o_ref.dtype)


# ----------------------------- wrapper -----------------------------
def _round_up(n, m):
    return -(-n // m) * m


def rmsnorm(x, weight, *, eps=EPS, row_tile=None):
    """x: (..., C); weight: (C,). Returns weight * x / rms(x), same shape/dtype."""
    orig_shape = x.shape
    C = orig_shape[-1]
    xf = x.reshape(-1, C)                              # collapse batch/seq dims
    n_rows = xf.shape[0]

    # ---- lane-dense packing: view (n_rows, C) as (n_rows/pack, pack*C=128) ----
    pack = 1
    if C < 128 and 128 % C == 0 and n_rows % (128 // C) == 0:
        pack = 128 // C
    lane_width = C * pack
    n_eff = n_rows // pack
    x_d = xf.reshape(n_eff, lane_width)                # free row-major view
    w_d = jnp.tile(weight, pack).reshape(1, lane_width)

    # ---- VMEM-budgeted row tile (double-buffered in + out, f32) ----
    itemsize = jnp.dtype(x.dtype).itemsize
    if row_tile is None:
        budget = 8 * 1024 * 1024                       # ~8 MiB of transfer buffers
        row_tile = max(8, budget // (4 * lane_width * itemsize))
    row_tile = min(int(row_tile), _round_up(n_eff, 8)) # don't exceed the problem
    row_tile = max(8, (row_tile // 8) * 8)             # sublane-aligned

    grid = (pl.cdiv(n_eff, row_tile),)                 # ragged edge block is masked

    compiler_params = pltpu.CompilerParams(
        dimension_semantics=("parallel",),             # megacore split on v7x
        vmem_limit_bytes=32 * 1024 * 1024,             # explicit, safe on v5e/v6e/v7x
    )

    if pack > 1:
        seg_ids = jnp.arange(lane_width) // C
        seg = (seg_ids[:, None] == seg_ids[None, :]).astype(jnp.float32)
        out = pl.pallas_call(
            functools.partial(_rmsnorm_packed_kernel, inv_c=1.0 / C, eps=eps),
            grid=grid,
            in_specs=[
                pl.BlockSpec((row_tile, lane_width), lambda i: (i, 0)),  # activations
                pl.BlockSpec((1, lane_width), lambda i: (0, 0)),         # tiled weight
                pl.BlockSpec((lane_width, lane_width), lambda i: (0, 0)),# seg ones
            ],
            out_specs=pl.BlockSpec((row_tile, lane_width), lambda i: (i, 0)),
            out_shape=jax.ShapeDtypeStruct((n_eff, lane_width), x.dtype),
            compiler_params=compiler_params,
        )(x_d, w_d, seg)
    else:
        out = pl.pallas_call(
            functools.partial(_rmsnorm_kernel, eps=eps),
            grid=grid,
            in_specs=[
                pl.BlockSpec((row_tile, lane_width), lambda i: (i, 0)),
                pl.BlockSpec((1, lane_width), lambda i: (0, 0)),
            ],
            out_specs=pl.BlockSpec((row_tile, lane_width), lambda i: (i, 0)),
            out_shape=jax.ShapeDtypeStruct((n_eff, lane_width), x.dtype),
            compiler_params=compiler_params,
        )(x_d, w_d)

    return out.reshape(orig_shape)


# ----------------------------- pure-JAX reference -----------------------------
def rmsnorm_ref(x, weight, eps=EPS):
    xf = x.astype(jnp.float32)
    ms = jnp.mean(xf * xf, axis=-1, keepdims=True)
    return (weight * (xf * lax.rsqrt(ms + eps))).astype(x.dtype)


# ----------------------------- main -----------------------------
if __name__ == "__main__":
    key = jax.random.PRNGKey(0)
    kx, kw = jax.random.split(key)

    B, T, C = 2, 8, 32                                 # small shapes per the module
    x = jax.random.normal(kx, (B, T, C), jnp.float32)
    # PyTorch initializes weight to ones; perturb so the scale is exercised.
    weight = 1.0 + 0.1 * jax.random.normal(kw, (C,), jnp.float32)

    out = jax.block_until_ready(rmsnorm(x, weight))

    ref = rmsnorm_ref(x, weight)
    assert np.allclose(np.asarray(out), np.asarray(ref), rtol=1e-5, atol=1e-5)

    print("KERNEL_OK")
</pallas_src>

<mosaic_0001>
module attributes {stable_mosaic.version = 11 : i64} {
  func.func @_rmsnorm_packed_kernel(%arg0: i32, %arg1: memref<8x128xf32, #tpu.memory_space<vmem>>, %arg2: memref<1x128xf32, #tpu.memory_space<vmem>>, %arg3: memref<128x128xf32, #tpu.memory_space<vmem>>, %arg4: memref<8x128xf32, #tpu.memory_space<vmem>>) attributes {dimension_semantics = [#tpu.dimension_semantics<parallel>], iteration_bounds = array<i64: 1>, scalar_prefetch = 0 : i64, scratch_operands = 0 : i64, tpu.core_type = #tpu.core_type<tc>, window_params = [{transform_indices = @transform_0, window_bounds = array<i64: 8, 128>}, {pipeline_mode = #tpu.pipeline_mode<synchronous>, transform_indices = @transform_1, window_bounds = array<i64: 1, 128>}, {pipeline_mode = #tpu.pipeline_mode<synchronous>, transform_indices = @transform_2, window_bounds = array<i64: 128, 128>}, {transform_indices = @transform_3, window_bounds = array<i64: 8, 128>}]} {
    %c0 = arith.constant 0 : index
    %c0_0 = arith.constant 0 : index
    %0 = vector.load %arg1[%c0, %c0_0] : memref<8x128xf32, #tpu.memory_space<vmem>>, vector<8x128xf32>
    %c0_1 = arith.constant 0 : index
    %c0_2 = arith.constant 0 : index
    %1 = vector.load %arg2[%c0_1, %c0_2] : memref<1x128xf32, #tpu.memory_space<vmem>>, vector<1x128xf32>
    %2 = arith.mulf %0, %0 : vector<8x128xf32>
    %c0_3 = arith.constant 0 : index
    %c0_4 = arith.constant 0 : index
    %3 = vector.load %arg3[%c0_3, %c0_4] : memref<128x128xf32, #tpu.memory_space<vmem>>, vector<128x128xf32>
    %cst = arith.constant dense<0.000000e+00> : vector<8x128xf32>
    %4 = tpu.matmul %2, %3, %cst {dimension_numbers = #tpu.dot_dimension_numbers<[1], [0], [0], [1], [0, 0, 1, 1], [], []>, precision = #tpu.contract_precision<fp32>} : vector<8x128xf32>, vector<128x128xf32>, vector<8x128xf32> -> vector<8x128xf32>
    %cst_5 = arith.constant 3.125000e-02 : f32
    %5 = vector.broadcast %cst_5 : f32 to vector<8x128xf32>
    %6 = arith.mulf %4, %5 : vector<8x128xf32>
    %cst_6 = arith.constant 9.99999997E-7 : f32
    %7 = vector.broadcast %cst_6 : f32 to vector<8x128xf32>
    %8 = arith.addf %6, %7 : vector<8x128xf32>
    %9 = math.rsqrt %8 : vector<8x128xf32>
    %10 = arith.mulf %0, %9 : vector<8x128xf32>
    %11 = vector.broadcast %1 : vector<1x128xf32> to vector<8x128xf32>
    %12 = arith.mulf %11, %10 : vector<8x128xf32>
    %c0_7 = arith.constant 0 : index
    %c0_8 = arith.constant 0 : index
    %13 = vector.load %arg4[%c0_7, %c0_8] : memref<8x128xf32, #tpu.memory_space<vmem>>, vector<8x128xf32>
    tpu.vector_store %arg4[%c0_7, %c0_8], %12 {strides = array<i32>} : memref<8x128xf32, #tpu.memory_space<vmem>>, vector<8x128xf32>,
    return
  }
  func.func @transform_0(%arg0: i32) -> (i32, i32) {
    %c0_i32 = arith.constant 0 : i32
    %c0_i32_0 = arith.constant 0 : i32
    return %arg0, %c0_i32 : i32, i32
  }
  func.func @transform_1(%arg0: i32) -> (i32, i32) {
    %c0_i32 = arith.constant 0 : i32
    %c0_i32_0 = arith.constant 0 : i32
    %c0_i32_1 = arith.constant 0 : i32
    return %c0_i32, %c0_i32_0 : i32, i32
  }
  func.func @transform_2(%arg0: i32) -> (i32, i32) {
    %c0_i32 = arith.constant 0 : i32
    %c0_i32_0 = arith.constant 0 : i32
    %c0_i32_1 = arith.constant 0 : i32
    return %c0_i32, %c0_i32_0 : i32, i32
  }
  func.func @transform_3(%arg0: i32) -> (i32, i32) {
    %c0_i32 = arith.constant 0 : i32
    %c0_i32_0 = arith.constant 0 : i32
    return %arg0, %c0_i32 : i32, i32
  }
}

</mosaic_0001>

<llo_original>
// kernel: tpu_custom_call.1
$region0: #{tpu_custom_call.1}
  #allocation0 [shape = 'u32[]', space=smem, size = 0x4, offset = 0x4, fixed_abs, tag = 'smem constant byte address 0x4 - core index']
  #allocation1 [shape = 'u32[72,128]{1,0:T(1,128)}', space=vmem, size = 0x9000, scoped, tag = 'internal scratch']
  %s0 = inlined_call_operand.hbm [shape: f32[4,128], index: 0, kind: input, shape index: {}]
  %s1 = inlined_call_operand.hbm [shape: f32[1,128], index: 1, kind: input, shape index: {}]
  %s2 = inlined_call_operand.hbm [shape: f32[128,128], index: 2, kind: input, shape index: {}]
  %s3 = inlined_call_operand.hbm [shape: f32[4,128], index: 3, kind: output, shape index: {}]
  %s4 = sld [smem:[#allocation0]]
  $region34: #{tpu_custom_call.1} parent=0
    _
  %s6 = ssub.s32 1, %s4
  %s7 = scalar_select 0, %s6, %s4
  $region1: #{tpu_custom_call.1} parent=0
    #allocation2 [shape = 'u8[4096]{0}', space=vmem, size = 0x1000, scoped, tag = 'input window, operand 0, single buffered']
    #allocation3 [shape = 's32[1]{0}', space=sflag, size = 0x4, scoped, tag = 'scoped memory for tpu_custom_call.1']
    #allocation4 [shape = 's32[1]{0}', space=sflag, size = 0x4, scoped, tag = 'scoped memory for tpu_custom_call.1']
    #allocation5 [shape = 'u8[512]{0}', space=vmem, size = 0x400, scoped, tag = 'input window, operand 1, single buffered']
    #allocation6 [shape = 's32[1]{0}', space=sflag, size = 0x4, scoped, tag = 'scoped memory for tpu_custom_call.1']
    #allocation7 [shape = 'u8[65536]{0}', space=vmem, size = 0x10000, scoped, tag = 'input window, operand 2, single buffered']
    #allocation8 [shape = 'u8[4096]{0}', space=vmem, size = 0x1000, scoped, tag = 'output window, operand 0, single buffered']
    %8 = vsyncpa [#allocation3], 0
    %9 = vsyncpa [#allocation6], 0
    %10 = vsyncpa [#allocation4], 0
    // Predicated region
    $region2: #{tpu_custom_call.1} parent=1 // pred_check
      _
    $region3: #{tpu_custom_call.1} parent=1 // pred_check_branch
      %12 = sbr.rel (0) target = $region5
    $region4: #{tpu_custom_call.1} parent=1 // pred_region
      %14 = vsyncadd [#allocation3], 64
      %s15 = sshll.u32 %s0, 4
      %s16 = int_to_ptr.hbm [resolvable:$true] %s15
      %s17 = sshll.u32 [#allocation2], 4
      %s18 = int_to_ptr.vmem [resolvable:$true] %s17
      %23 = dma.hbm_to_vmem [thread:$0]  %s16, 64, %s18, [#allocation3], 64, 64, 4
    $region5: #{tpu_custom_call.1} parent=1 // pred_fallthru
      _
    // Predicated region
    $region6: #{tpu_custom_call.1} parent=1 // pred_check
      _
    $region7: #{tpu_custom_call.1} parent=1 // pred_check_branch
      %25 = sbr.rel (0) target = $region9
    $region8: #{tpu_custom_call.1} parent=1 // pred_region
      %27 = vsyncadd [#allocation6], 0
      %s29 = sshll.u32 %s1, 4
      %s30 = int_to_ptr.hbm [resolvable:$true] %s29
      %s31 = sshll.u32 [#allocation5], 4
      %s32 = int_to_ptr.vmem [resolvable:$true] %s31
      %34 = dma.hbm_to_vmem [thread:$0]  %s30, 16, %s32, [#allocation6]
    $region9: #{tpu_custom_call.1} parent=1 // pred_fallthru
      _
    // Predicated region
    $region10: #{tpu_custom_call.1} parent=1 // pred_check
      _
    $region11: #{tpu_custom_call.1} parent=1 // pred_check_branch
      %36 = sbr.rel (0) target = $region13
    $region12: #{tpu_custom_call.1} parent=1 // pred_region
      %38 = vsyncadd [#allocation6], 0
      %s39 = sshll.u32 %s2, 4
      %s40 = int_to_ptr.hbm [resolvable:$true] %s39
      %s41 = sshll.u32 [#allocation7], 4
      %s42 = int_to_ptr.vmem [resolvable:$true] %s41
      %47 = dma.hbm_to_vmem [thread:$0]  %s40, 2048, %s42, [#allocation6], 128, 128, 8
    $region13: #{tpu_custom_call.1} parent=1 // pred_fallthru
      _
    // Predicated region
    $region14: #{tpu_custom_call.1} parent=1 // pred_check
      _
    $region15: #{tpu_custom_call.1} parent=1 // pred_check_branch
      %49 = sbr.rel (0) target = $region17
    $region16: #{tpu_custom_call.1} parent=1 // pred_region
      %51 = dma.done [#allocation3], 128
    $region17: #{tpu_custom_call.1} parent=1 // pred_fallthru
      _
    // Predicated region
    $region18: #{tpu_custom_call.1} parent=1 // pred_check
      _
    $region19: #{tpu_custom_call.1} parent=1 // pred_check_branch
      %53 = sbr.rel (0) target = $region21
    $region20: #{tpu_custom_call.1} parent=1 // pred_region
      %55 = dma.done [#allocation6], 16
    $region21: #{tpu_custom_call.1} parent=1 // pred_fallthru
      _
    // Predicated region
    $region22: #{tpu_custom_call.1} parent=1 // pred_check
      _
    $region23: #{tpu_custom_call.1} parent=1 // pred_check_branch
      %57 = sbr.rel (0) target = $region25
    $region24: #{tpu_custom_call.1} parent=1 // pred_region
      %59 = dma.done [#allocation6], 2048
    $region25: #{tpu_custom_call.1} parent=1 // pred_fallthru
      _
    %v60 = vld [vmem:[#allocation2] sm:$0xff]
    %v61 = vld [vmem:[#allocation5] sm:$0x1]
    %v62 = vmul.f32 %v60, %v60
    %v63 = vld [vmem:[#allocation7] sm:$0xff]
    %v64 = vld [vmem:[#allocation7 + $0x8] sm:$0xff]
    %v65 = vld [vmem:[#allocation7 + $0x10] sm:$0xff]
    %v66 = vld [vmem:[#allocation7 + $0x18] sm:$0xff]
    %v67 = vld [vmem:[#allocation7 + $0x20] sm:$0xff]
    %v68 = vld [vmem:[#allocation7 + $0x28] sm:$0xff]
    %v69 = vld [vmem:[#allocation7 + $0x30] sm:$0xff]
    %v70 = vld [vmem:[#allocation7 + $0x38] sm:$0xff]
    %v71 = vld [vmem:[#allocation7 + $0x40] sm:$0xff]
    %v72 = vld [vmem:[#allocation7 + $0x48] sm:$0xff]
    %v73 = vld [vmem:[#allocation7 + $0x50] sm:$0xff]
    %v74 = vld [vmem:[#allocation7 + $0x58] sm:$0xff]
    %v75 = vld [vmem:[#allocation7 + $0x60] sm:$0xff]
    %v76 = vld [vmem:[#allocation7 + $0x68] sm:$0xff]
    %v77 = vld [vmem:[#allocation7 + $0x70] sm:$0xff]
    %v78 = vld [vmem:[#allocation7 + $0x78] sm:$0xff]
    %v79 = vand.u32 %v78, 4294901760
    %80 = vmatpush.msra.mxu0 %v79
    %v81 = vand.u32 %v77, 4294901760
    %82 = vmatpush.msra.mxu0 %v81
    %v83 = vand.u32 %v76, 4294901760
    %84 = vmatpush.msra.mxu0 %v83
    %v85 = vand.u32 %v75, 4294901760
    %86 = vmatpush.msra.mxu0 %v85
    %v87 = vand.u32 %v74, 4294901760
    %88 = vmatpush.msra.mxu0 %v87
    %v89 = vand.u32 %v73, 4294901760
    %90 = vmatpush.msra.mxu0 %v89
    %v91 = vand.u32 %v72, 4294901760
    %92 = vmatpush.msra.mxu0 %v91
    %v93 = vand.u32 %v71, 4294901760
    %94 = vmatpush.msra.mxu0 %v93
    %v95 = vand.u32 %v70, 4294901760
    %96 = vmatpush.msra.mxu0 %v95
    %v97 = vand.u32 %v69, 4294901760
    %98 = vmatpush.msra.mxu0 %v97
    %v99 = vand.u32 %v68, 4294901760
    %100 = vmatpush.msra.mxu0 %v99
    %v101 = vand.u32 %v67, 4294901760
    %102 = vmatpush.msra.mxu0 %v101
    %v103 = vand.u32 %v66, 4294901760
    %104 = vmatpush.msra.mxu0 %v103
    %v105 = vand.u32 %v65, 4294901760
    %106 = vmatpush.msra.mxu0 %v105
    %v107 = vand.u32 %v64, 4294901760
    %108 = vmatpush.msra.mxu0 %v107
    %v109 = vand.u32 %v63, 4294901760
    %110 = vmatpush.msra.mxu0 %v109
    %v111 = vand.u32 %v62, 4294901760
    %v112 = vsub.f32 %v62, %v111
    %v113 = vand.u32 %v112, 4294901760
    %v114 = vsub.f32 %v112, %v113
    %v115 = vand.u32 %v114, 4294901760
    %116 = vmatmul.f32.gmra.mxu0 %v115
    %v117 = vpop.f32.mrf.mxu0
    %v118 = vadd.f32 0.0, %v117
    %119 = vdwg.mxu0
    %v120 = vand.u32 %v78, 4294901760
    %v121 = vsub.f32 %v78, %v120
    %v122 = vand.u32 %v121, 4294901760
    %v123 = vsub.f32 %v121, %v122
    %v124 = vand.u32 %v123, 4294901760
    %125 = vmatpush.msra.mxu0 %v124
    %v126 = vand.u32 %v77, 4294901760
    %v127 = vsub.f32 %v77, %v126
    %v128 = vand.u32 %v127, 4294901760
    %v129 = vsub.f32 %v127, %v128
    %v130 = vand.u32 %v129, 4294901760
    %131 = vmatpush.msra.mxu0 %v130
    %v132 = vand.u32 %v76, 4294901760
    %v133 = vsub.f32 %v76, %v132
    %v134 = vand.u32 %v133, 4294901760
    %v135 = vsub.f32 %v133, %v134
    %v136 = vand.u32 %v135, 4294901760
    %137 = vmatpush.msra.mxu0 %v136
    %v138 = vand.u32 %v75, 4294901760
    %v139 = vsub.f32 %v75, %v138
    %v140 = vand.u32 %v139, 4294901760
    %v141 = vsub.f32 %v139, %v140
    %v142 = vand.u32 %v141, 4294901760
    %143 = vmatpush.msra.mxu0 %v142
    %v144 = vand.u32 %v74, 4294901760
    %v145 = vsub.f32 %v74, %v144
    %v146 = vand.u32 %v145, 4294901760
    %v147 = vsub.f32 %v145, %v146
    %v148 = vand.u32 %v147, 4294901760
    %149 = vmatpush.msra.mxu0 %v148
    %v150 = vand.u32 %v73, 4294901760
    %v151 = vsub.f32 %v73, %v150
    %v152 = vand.u32 %v151, 4294901760
    %v153 = vsub.f32 %v151, %v152
    %v154 = vand.u32 %v153, 4294901760
    %155 = vmatpush.msra.mxu0 %v154
    %v156 = vand.u32 %v72, 4294901760
    %v157 = vsub.f32 %v72, %v156
    %v158 = vand.u32 %v157, 4294901760
    %v159 = vsub.f32 %v157, %v158
    %v160 = vand.u32 %v159, 4294901760
    %161 = vmatpush.msra.mxu0 %v160
    %v162 = vand.u32 %v71, 4294901760
    %v163 = vsub.f32 %v71, %v162
    %v164 = vand.u32 %v163, 4294901760
    %v165 = vsub.f32 %v163, %v164
    %v166 = vand.u32 %v165, 4294901760
    %167 = vmatpush.msra.mxu0 %v166
    %v168 = vand.u32 %v70, 4294901760
    %v169 = vsub.f32 %v70, %v168
    %v170 = vand.u32 %v169, 4294901760
    %v171 = vsub.f32 %v169, %v170
    %v172 = vand.u32 %v171, 4294901760
    %173 = vmatpush.msra.mxu0 %v172
    %v174 = vand.u32 %v69, 4294901760
    %v175 = vsub.f32 %v69, %v174
    %v176 = vand.u32 %v175, 4294901760
    %v177 = vsub.f32 %v175, %v176
    %v178 = vand.u32 %v177, 4294901760
    %179 = vmatpush.msra.mxu0 %v178
    %v180 = vand.u32 %v68, 4294901760
    %v181 = vsub.f32 %v68, %v180
    %v182 = vand.u32 %v181, 4294901760
    %v183 = vsub.f32 %v181, %v182
    %v184 = vand.u32 %v183, 4294901760
    %185 = vmatpush.msra.mxu0 %v184
    %v186 = vand.u32 %v67, 4294901760
    %v187 = vsub.f32 %v67, %v186
    %v188 = vand.u32 %v187, 4294901760
    %v189 = vsub.f32 %v187, %v188
    %v190 = vand.u32 %v189, 4294901760
    %191 = vmatpush.msra.mxu0 %v190
    %v192 = vand.u32 %v66, 4294901760
    %v193 = vsub.f32 %v66, %v192
    %v194 = vand.u32 %v193, 4294901760
    %v195 = vsub.f32 %v193, %v194
    %v196 = vand.u32 %v195, 4294901760
    %197 = vmatpush.msra.mxu0 %v196
    %v198 = vand.u32 %v65, 4294901760
    %v199 = vsub.f32 %v65, %v198
    %v200 = vand.u32 %v199, 4294901760
    %v201 = vsub.f32 %v199, %v200
    %v202 = vand.u32 %v201, 4294901760
    %203 = vmatpush.msra.mxu0 %v202
    %v204 = vand.u32 %v64, 4294901760
    %v205 = vsub.f32 %v64, %v204
    %v206 = vand.u32 %v205, 4294901760
    %v207 = vsub.f32 %v205, %v206
    %v208 = vand.u32 %v207, 4294901760
    %209 = vmatpush.msra.mxu0 %v208
    %v210 = vand.u32 %v63, 4294901760
    %v211 = vsub.f32 %v63, %v210
    %v212 = vand.u32 %v211, 4294901760
    %v213 = vsub.f32 %v211, %v212
    %v214 = vand.u32 %v213, 4294901760
    %215 = vmatpush.msra.mxu0 %v214
    %v216 = vand.u32 %v62, 4294901760
    %217 = vmatmul.f32.gmra.mxu0 %v216
    %v218 = vpop.f32.mrf.mxu0
    %v219 = vadd.f32 %v118, %v218
    %220 = vdwg.mxu0
    %v221 = vand.u32 %v78, 4294901760
    %v222 = vsub.f32 %v78, %v221
    %223 = vmatpush.msra.mxu0 %v222
    %v224 = vand.u32 %v77, 4294901760
    %v225 = vsub.f32 %v77, %v224
    %226 = vmatpush.msra.mxu0 %v225
    %v227 = vand.u32 %v76, 4294901760
    %v228 = vsub.f32 %v76, %v227
    %229 = vmatpush.msra.mxu0 %v228
    %v230 = vand.u32 %v75, 4294901760
    %v231 = vsub.f32 %v75, %v230
    %232 = vmatpush.msra.mxu0 %v231
    %v233 = vand.u32 %v74, 4294901760
    %v234 = vsub.f32 %v74, %v233
    %235 = vmatpush.msra.mxu0 %v234
    %v236 = vand.u32 %v73, 4294901760
    %v237 = vsub.f32 %v73, %v236
    %238 = vmatpush.msra.mxu0 %v237
    %v239 = vand.u32 %v72, 4294901760
    %v240 = vsub.f32 %v72, %v239
    %241 = vmatpush.msra.mxu0 %v240
    %v242 = vand.u32 %v71, 4294901760
    %v243 = vsub.f32 %v71, %v242
    %244 = vmatpush.msra.mxu0 %v243
    %v245 = vand.u32 %v70, 4294901760
    %v246 = vsub.f32 %v70, %v245
    %247 = vmatpush.msra.mxu0 %v246
    %v248 = vand.u32 %v69, 4294901760
    %v249 = vsub.f32 %v69, %v248
    %250 = vmatpush.msra.mxu0 %v249
    %v251 = vand.u32 %v68, 4294901760
    %v252 = vsub.f32 %v68, %v251
    %253 = vmatpush.msra.mxu0 %v252
    %v254 = vand.u32 %v67, 4294901760
    %v255 = vsub.f32 %v67, %v254
    %256 = vmatpush.msra.mxu0 %v255
    %v257 = vand.u32 %v66, 4294901760
    %v258 = vsub.f32 %v66, %v257
    %259 = vmatpush.msra.mxu0 %v258
    %v260 = vand.u32 %v65, 4294901760
    %v261 = vsub.f32 %v65, %v260
    %262 = vmatpush.msra.mxu0 %v261
    %v263 = vand.u32 %v64, 4294901760
    %v264 = vsub.f32 %v64, %v263
    %265 = vmatpush.msra.mxu0 %v264
    %v266 = vand.u32 %v63, 4294901760
    %v267 = vsub.f32 %v63, %v266
    %268 = vmatpush.msra.mxu0 %v267
    %v269 = vand.u32 %v62, 4294901760
    %v270 = vsub.f32 %v62, %v269
    %271 = vmatmul.f32.gmra.mxu0 %v270
    %v272 = vpop.f32.mrf.mxu0
    %v273 = vadd.f32 %v219, %v272
    %274 = vdwg.mxu0
    %v275 = vand.u32 %v78, 4294901760
    %276 = vmatpush.msra.mxu0 %v275
    %v277 = vand.u32 %v77, 4294901760
    %278 = vmatpush.msra.mxu0 %v277
    %v279 = vand.u32 %v76, 4294901760
    %280 = vmatpush.msra.mxu0 %v279
    %v281 = vand.u32 %v75, 4294901760
    %282 = vmatpush.msra.mxu0 %v281
    %v283 = vand.u32 %v74, 4294901760
    %284 = vmatpush.msra.mxu0 %v283
    %v285 = vand.u32 %v73, 4294901760
    %286 = vmatpush.msra.mxu0 %v285
    %v287 = vand.u32 %v72, 4294901760
    %288 = vmatpush.msra.mxu0 %v287
    %v289 = vand.u32 %v71, 4294901760
    %290 = vmatpush.msra.mxu0 %v289
    %v291 = vand.u32 %v70, 4294901760
    %292 = vmatpush.msra.mxu0 %v291
    %v293 = vand.u32 %v69, 4294901760
    %294 = vmatpush.msra.mxu0 %v293
    %v295 = vand.u32 %v68, 4294901760
    %296 = vmatpush.msra.mxu0 %v295
    %v297 = vand.u32 %v67, 4294901760
    %298 = vmatpush.msra.mxu0 %v297
    %v299 = vand.u32 %v66, 4294901760
    %300 = vmatpush.msra.mxu0 %v299
    %v301 = vand.u32 %v65, 4294901760
    %302 = vmatpush.msra.mxu0 %v301
    %v303 = vand.u32 %v64, 4294901760
    %304 = vmatpush.msra.mxu0 %v303
    %v305 = vand.u32 %v63, 4294901760
    %306 = vmatpush.msra.mxu0 %v305
    %v307 = vand.u32 %v62, 4294901760
    %v308 = vsub.f32 %v62, %v307
    %v309 = vand.u32 %v308, 4294901760
    %310 = vmatmul.f32.gmra.mxu0 %v309
    %v311 = vpop.f32.mrf.mxu0
    %v312 = vadd.f32 %v273, %v311
    %313 = vdwg.mxu0
    %v314 = vand.u32 %v78, 4294901760
    %v315 = vsub.f32 %v78, %v314
    %v316 = vand.u32 %v315, 4294901760
    %317 = vmatpush.msra.mxu0 %v316
    %v318 = vand.u32 %v77, 4294901760
    %v319 = vsub.f32 %v77, %v318
    %v320 = vand.u32 %v319, 4294901760
    %321 = vmatpush.msra.mxu0 %v320
    %v322 = vand.u32 %v76, 4294901760
    %v323 = vsub.f32 %v76, %v322
    %v324 = vand.u32 %v323, 4294901760
    %325 = vmatpush.msra.mxu0 %v324
    %v326 = vand.u32 %v75, 4294901760
    %v327 = vsub.f32 %v75, %v326
    %v328 = vand.u32 %v327, 4294901760
    %329 = vmatpush.msra.mxu0 %v328
    %v330 = vand.u32 %v74, 4294901760
    %v331 = vsub.f32 %v74, %v330
    %v332 = vand.u32 %v331, 4294901760
    %333 = vmatpush.msra.mxu0 %v332
    %v334 = vand.u32 %v73, 4294901760
    %v335 = vsub.f32 %v73, %v334
    %v336 = vand.u32 %v335, 4294901760
    %337 = vmatpush.msra.mxu0 %v336
    %v338 = vand.u32 %v72, 4294901760
    %v339 = vsub.f32 %v72, %v338
    %v340 = vand.u32 %v339, 4294901760
    %341 = vmatpush.msra.mxu0 %v340
    %v342 = vand.u32 %v71, 4294901760
    %v343 = vsub.f32 %v71, %v342
    %v344 = vand.u32 %v343, 4294901760
    %345 = vmatpush.msra.mxu0 %v344
    %v346 = vand.u32 %v70, 4294901760
    %v347 = vsub.f32 %v70, %v346
    %v348 = vand.u32 %v347, 4294901760
    %349 = vmatpush.msra.mxu0 %v348
    %v350 = vand.u32 %v69, 4294901760
    %v351 = vsub.f32 %v69, %v350
    %v352 = vand.u32 %v351, 4294901760
    %353 = vmatpush.msra.mxu0 %v352
    %v354 = vand.u32 %v68, 4294901760
    %v355 = vsub.f32 %v68, %v354
    %v356 = vand.u32 %v355, 4294901760
    %357 = vmatpush.msra.mxu0 %v356
    %v358 = vand.u32 %v67, 4294901760
    %v359 = vsub.f32 %v67, %v358
    %v360 = vand.u32 %v359, 4294901760
    %361 = vmatpush.msra.mxu0 %v360
    %v362 = vand.u32 %v66, 4294901760
    %v363 = vsub.f32 %v66, %v362
    %v364 = vand.u32 %v363, 4294901760
    %365 = vmatpush.msra.mxu0 %v364
    %v366 = vand.u32 %v65, 4294901760
    %v367 = vsub.f32 %v65, %v366
    %v368 = vand.u32 %v367, 4294901760
    %369 = vmatpush.msra.mxu0 %v368
    %v370 = vand.u32 %v64, 4294901760
    %v371 = vsub.f32 %v64, %v370
    %v372 = vand.u32 %v371, 4294901760
    %373 = vmatpush.msra.mxu0 %v372
    %v374 = vand.u32 %v63, 4294901760
    %v375 = vsub.f32 %v63, %v374
    %v376 = vand.u32 %v375, 4294901760
    %377 = vmatpush.msra.mxu0 %v376
    %v378 = vand.u32 %v62, 4294901760
    %379 = vmatmul.f32.gmra.mxu0 %v378
    %v380 = vpop.f32.mrf.mxu0
    %v381 = vadd.f32 %v312, %v380
    %382 = vdwg.mxu0
    %v383 = vand.u32 %v78, 4294901760
    %384 = vmatpush.msra.mxu0 %v383
    %v385 = vand.u32 %v77, 4294901760
    %386 = vmatpush.msra.mxu0 %v385
    %v387 = vand.u32 %v76, 4294901760
    %388 = vmatpush.msra.mxu0 %v387
    %v389 = vand.u32 %v75, 4294901760
    %390 = vmatpush.msra.mxu0 %v389
    %v391 = vand.u32 %v74, 4294901760
    %392 = vmatpush.msra.mxu0 %v391
    %v393 = vand.u32 %v73, 4294901760
    %394 = vmatpush.msra.mxu0 %v393
    %v395 = vand.u32 %v72, 4294901760
    %396 = vmatpush.msra.mxu0 %v395
    %v397 = vand.u32 %v71, 4294901760
    %398 = vmatpush.msra.mxu0 %v397
    %v399 = vand.u32 %v70, 4294901760
    %400 = vmatpush.msra.mxu0 %v399
    %v401 = vand.u32 %v69, 4294901760
    %402 = vmatpush.msra.mxu0 %v401
    %v403 = vand.u32 %v68, 4294901760
    %404 = vmatpush.msra.mxu0 %v403
    %v405 = vand.u32 %v67, 4294901760
    %406 = vmatpush.msra.mxu0 %v405
    %v407 = vand.u32 %v66, 4294901760
    %408 = vmatpush.msra.mxu0 %v407
    %v409 = vand.u32 %v65, 4294901760
    %410 = vmatpush.msra.mxu0 %v409
    %v411 = vand.u32 %v64, 4294901760
    %412 = vmatpush.msra.mxu0 %v411
    %v413 = vand.u32 %v63, 4294901760
    %414 = vmatpush.msra.mxu0 %v413
    %v415 = vand.u32 %v62, 4294901760
    %416 = vmatmul.f32.gmra.mxu0 %v415
    %v417 = vpop.f32.mrf.mxu0
    %v418 = vadd.f32 %v381, %v417
    %419 = vdwg.mxu0
    %v420 = vmul.f32 %v418, 0.03125
    %v421 = vadd.f32 %v420, 1e-06
    %v422 = vrsqrt.pop %v421
    %v423 = vmul.f32 %v422, %v421
    %v424 = vmul.f32 %v423, %v422
    %v425 = vmul.f32 0.5, %v424
    %v426 = vsub.f32 1.5, %v425
    %v427 = vmul.f32 %v422, %v426
    %vm428 = vweird.f32 %v421
    %vm429 = vweird.f32 %v422
    %vm430 = vmor %vm428, %vm429
    %v431 = vsel %vm430, %v422, %v427
    %v432 = vmul.f32 %v60, %v431
    %v434 = vperm.slane %v61, 0
    %v436 = vmul.f32 %v434, %v432
    %437 = vst [vmem:[#allocation8] sm:$0xff] %v436
    // Predicated region
    $region26: #{tpu_custom_call.1} parent=1 // pred_check
      _
    $region27: #{tpu_custom_call.1} parent=1 // pred_check_branch
      %439 = sbr.rel (0) target = $region29
    $region28: #{tpu_custom_call.1} parent=1 // pred_region
      %441 = vsyncadd [#allocation4], 64
      %s442 = sshll.u32 [#allocation8], 4
      %s443 = int_to_ptr.vmem [resolvable:$true] %s442
      %s444 = sshll.u32 %s3, 4
      %s445 = int_to_ptr.hbm [resolvable:$true] %s444
      %450 = dma.vmem_to_hbm [thread:$0]  %s443, 64, %s445, [#allocation4], 64, 64, 4
    $region29: #{tpu_custom_call.1} parent=1 // pred_fallthru
      _
    // Predicated region
    $region30: #{tpu_custom_call.1} parent=1 // pred_check
      _
    $region31: #{tpu_custom_call.1} parent=1 // pred_check_branch
      %452 = sbr.rel (0) target = $region33
    $region32: #{tpu_custom_call.1} parent=1 // pred_region
      %454 = dma.done [#allocation4], 128
    $region33: #{tpu_custom_call.1} parent=1 // pred_fallthru
      _
    %455 = vsyncpa [#allocation3], 1
    %456 = vsyncpa [#allocation6], 1
    %457 = vsyncpa [#allocation4], 1

</llo_original>
